<compile_context>
chip_gen: v7x
topology: tpu7x:2x2x1
jax: 0.10.0
libtpu: 0.0.40
codegen_flags: <defaults>
</compile_context>

<pallas_src>
import math

import jax
import jax.numpy as jnp
from jax.experimental import pallas as pl
from jax.experimental.pallas import tpu as pltpu


def _round_up(x, m):
    return ((x + m - 1) // m) * m


def _bimap_kernel(x_ref, kt_ref, o_ref):
    # x_ref : (TB, pack*n_in^2)            slab of row-major flattened SPD inputs
    # kt_ref: (pack*n_in^2, pack*n_out^2)  block-diag kron(W, W)^T, grid-invariant
    # o_ref : (TB, pack*n_out^2)           row-major flattened outputs
    o_ref[...] = jnp.dot(
        x_ref[...], kt_ref[...], preferred_element_type=jnp.float32
    ).astype(o_ref.dtype)


def bimap(x, weight, *, batch_tile=8192, compute_dtype=jnp.bfloat16):
    """Apply Z = W @ X @ W^T over all leading batch dims of x.

    x:      (*, in_spatial, in_spatial)
    weight: (out_spatial, in_spatial)
    returns (*, out_spatial, out_spatial) with x.dtype

    batch_tile: max SPD matrices processed per grid step.
    compute_dtype: dtype of the GEMM operands (bf16 halves HBM read traffic;
                   accumulation is always f32). Use jnp.float32 if the model
                   truly needs f32 multiplies.
    """
    *batch_dims, n_in, n_in2 = x.shape
    assert n_in == n_in2, "input must be square SPD matrices"
    n_out, n_in_w = weight.shape
    assert n_in_w == n_in, "weight must be (out_spatial, in_spatial)"

    out_dtype = x.dtype
    cd_bytes = jnp.dtype(compute_dtype).itemsize
    od_bytes = jnp.dtype(out_dtype).itemsize

    k0 = n_in * n_in
    n0 = n_out * n_out

    # kron(W, W)^T must comfortably fit (single-buffered) in VMEM.
    kron_bytes = k0 * n0 * cd_bytes
    assert kron_bytes <= 4 * 1024 * 1024, (
        f"kron(W, W) would be {kron_bytes} bytes; use a chained-matmul kernel "
        f"for in_spatial={n_in}, out_spatial={n_out}"
    )

    b_total = math.prod(batch_dims) if batch_dims else 1
    if b_total == 0:
        return jnp.zeros((*batch_dims, n_out, n_out), out_dtype)

    # Pack two SPD matrices per GEMM row when that makes the output slab a
    # full 128 lanes (unmasked stores). The pack is just a row-major reshape.
    pack = 2 if (b_total % 2 == 0 and (2 * n0) % 128 == 0) else 1
    kp, np_ = pack * k0, pack * n0
    rows = b_total // pack

    x2d = x.reshape(rows, kp).astype(compute_dtype)

    kt0 = jnp.kron(weight, weight).T.astype(jnp.float32)      # (k0, n0)
    if pack == 1:
        kt = kt0.astype(compute_dtype)
    else:
        kt = jnp.zeros((kp, np_), jnp.float32)
        for p in range(pack):
            kt = kt.at[p * k0:(p + 1) * k0, p * n0:(p + 1) * n0].set(kt0)
        kt = kt.astype(compute_dtype)

    # --- batch tiling ------------------------------------------------------
    gran = 16 if cd_bytes == 2 else 8          # sublane granularity (bf16 packs 16)
    row_cap = max(gran, _round_up(max(batch_tile // pack, 1), gran))
    if rows > row_cap:
        tb = row_cap                           # ragged last block masked by Pallas
    elif rows >= 1024:
        # Keep at least 2 grid steps so both v7x TensorCores get work.
        tb = _round_up(pl.cdiv(rows, 2), gran)
    else:
        tb = rows                              # single step; block == full extent
    num_steps = pl.cdiv(rows, tb)

    # --- VMEM budgeting ----------------------------------------------------
    # double-buffered x/out tiles + single-buffered kt
    vmem_bytes = 2 * tb * (kp * cd_bytes + np_ * od_bytes) + kp * np_ * cd_bytes
    vmem_limit = None
    if vmem_bytes > 12 * 1024 * 1024:
        # give Mosaic explicit headroom (v5e default scoped VMEM is only 16 MiB)
        vmem_limit = int(min(vmem_bytes + 4 * 1024 * 1024, 32 * 1024 * 1024))

    out2d = pl.pallas_call(
        _bimap_kernel,
        out_shape=jax.ShapeDtypeStruct((rows, np_), out_dtype),
        grid_spec=pltpu.PrefetchScalarGridSpec(
            num_scalar_prefetch=0,
            grid=(num_steps,),
            in_specs=[
                pl.BlockSpec((tb, kp), lambda b: (b, 0)),
                # grid-invariant: single buffer, never re-DMA'd
                pl.BlockSpec((kp, np_), lambda b: (0, 0),
                             pipeline_mode=pl.Buffered(1)),
            ],
            out_specs=pl.BlockSpec((tb, np_), lambda b: (b, 0)),
        ),
        compiler_params=pltpu.CompilerParams(
            dimension_semantics=("parallel",),
            vmem_limit_bytes=vmem_limit,
        ),
    )(x2d, kt)

    return out2d.reshape(*batch_dims, n_out, n_out)


def make_stiefel_weight(key, in_spatial, out_spatial, dtype=jnp.float32):
    """Deterministic Stiefel-manifold-style init (orthonormal via QR),
    mirroring geoopt.Stiefel().random and the module's weight_shape logic."""
    is_upscale = out_spatial > in_spatial
    p, n = (out_spatial, in_spatial) if is_upscale else (in_spatial, out_spatial)
    g = jax.random.normal(key, (p, n), dtype=jnp.float32)
    q, _ = jnp.linalg.qr(g)            # (p, n), orthonormal columns
    w_raw = q.astype(dtype)
    # .weight property: _weight if upscale else _weight.mT -> always (out, in)
    return w_raw if is_upscale else w_raw.T


if __name__ == "__main__":
    key = jax.random.PRNGKey(0)
    k_x, k_w = jax.random.split(key)

    B, C = 2, 4
    in_spatial, out_spatial = 16, 8

    # Build SPD inputs: X = A @ A^T + eps * I
    a = jax.random.normal(k_x, (B, C, in_spatial, in_spatial), dtype=jnp.float32)
    x = jnp.einsum("bcij,bckj->bcik", a, a) + 1e-3 * jnp.eye(in_spatial,
                                                             dtype=jnp.float32)

    weight = make_stiefel_weight(k_w, in_spatial, out_spatial)  # (out, in)

    z = jax.block_until_ready(bimap(x, weight))
    assert z.shape == (B, C, out_spatial, out_spatial)

    # --- check 1 (tight): same bf16-quantized operands, f32 accumulation ----
    x_q = x.astype(jnp.bfloat16).astype(jnp.float32)
    kt_q = jnp.kron(weight, weight).T.astype(jnp.bfloat16).astype(jnp.float32)
    z_ref_q = jnp.dot(
        x_q.reshape(-1, in_spatial * in_spatial), kt_q,
        precision=jax.lax.Precision.HIGHEST,
    ).reshape(B, C, out_spatial, out_spatial)
    assert jnp.allclose(z, z_ref_q, atol=1e-2, rtol=1e-3), (
        float(jnp.max(jnp.abs(z - z_ref_q)))
    )

    # --- check 2 (loose): full-f32 reference, bf16 quantization error budget -
    z_ref = jnp.einsum(
        "oi,bcij,pj->bcop", weight, x, weight,
        precision=jax.lax.Precision.HIGHEST,
    )
    err = float(jnp.max(jnp.abs(z - z_ref)))
    scale = float(jnp.max(jnp.abs(z_ref)))
    assert err <= 2e-2 * scale, (err, scale)

    print("KERNEL_OK")
</pallas_src>

<mosaic_0001>
module attributes {stable_mosaic.version = 11 : i64} {
  func.func @_bimap_kernel(%arg0: i32, %arg1: memref<4x512xbf16, #tpu.memory_space<vmem>>, %arg2: memref<512x128xbf16, #tpu.memory_space<vmem>>, %arg3: memref<4x128xf32, #tpu.memory_space<vmem>>) attributes {dimension_semantics = [#tpu.dimension_semantics<parallel>], iteration_bounds = array<i64: 1>, scalar_prefetch = 0 : i64, scratch_operands = 0 : i64, tpu.core_type = #tpu.core_type<tc>, window_params = [{transform_indices = @transform_0, window_bounds = array<i64: 4, 512>}, {pipeline_mode = #tpu.pipeline_mode<synchronous>, transform_indices = @transform_1, window_bounds = array<i64: 512, 128>}, {transform_indices = @transform_2, window_bounds = array<i64: 4, 128>}]} {
    %c0 = arith.constant 0 : index
    %c0_0 = arith.constant 0 : index
    %0 = vector.load %arg1[%c0, %c0_0] : memref<4x512xbf16, #tpu.memory_space<vmem>>, vector<4x512xbf16>
    %c0_1 = arith.constant 0 : index
    %c0_2 = arith.constant 0 : index
    %1 = vector.load %arg2[%c0_1, %c0_2] : memref<512x128xbf16, #tpu.memory_space<vmem>>, vector<512x128xbf16>
    %cst = arith.constant dense<0.000000e+00> : vector<4x128xf32>
    %2 = tpu.matmul %0, %1, %cst {dimension_numbers = #tpu.dot_dimension_numbers<[1], [0], [0], [1], [0, 0, 1, 1], [], []>} : vector<4x512xbf16>, vector<512x128xbf16>, vector<4x128xf32> -> vector<4x128xf32>
    %c0_3 = arith.constant 0 : index
    %c0_4 = arith.constant 0 : index
    %3 = vector.load %arg3[%c0_3, %c0_4] : memref<4x128xf32, #tpu.memory_space<vmem>>, vector<4x128xf32>
    tpu.vector_store %arg3[%c0_3, %c0_4], %2 {strides = array<i32>} : memref<4x128xf32, #tpu.memory_space<vmem>>, vector<4x128xf32>,
    return
  }
  func.func @transform_0(%arg0: i32) -> (i32, i32) {
    %c0_i32 = arith.constant 0 : i32
    %c0_i32_0 = arith.constant 0 : i32
    return %arg0, %c0_i32 : i32, i32
  }
  func.func @transform_1(%arg0: i32) -> (i32, i32) {
    %c0_i32 = arith.constant 0 : i32
    %c0_i32_0 = arith.constant 0 : i32
    %c0_i32_1 = arith.constant 0 : i32
    return %c0_i32, %c0_i32_0 : i32, i32
  }
  func.func @transform_2(%arg0: i32) -> (i32, i32) {
    %c0_i32 = arith.constant 0 : i32
    %c0_i32_0 = arith.constant 0 : i32
    return %arg0, %c0_i32 : i32, i32
  }
}

</mosaic_0001>

<llo_original>
// kernel: tpu_custom_call.1
$region0: #{tpu_custom_call.1}
  #allocation0 [shape = 'u32[]', space=smem, size = 0x4, offset = 0x4, fixed_abs, tag = 'smem constant byte address 0x4 - core index']
  #allocation1 [shape = 'u32[144,128]{1,0:T(1,128)}', space=vmem, size = 0x12000, scoped, tag = 'internal scratch']
  %s0 = inlined_call_operand.hbm [shape: bf16[4,512], index: 0, kind: input, shape index: {}]
  %s1 = inlined_call_operand.hbm [shape: bf16[512,128], index: 1, kind: input, shape index: {}]
  %s2 = inlined_call_operand.hbm [shape: f32[4,128], index: 2, kind: output, shape index: {}]
  %s3 = sld [smem:[#allocation0]]
  $region26: #{tpu_custom_call.1} parent=0
    _
  %s5 = ssub.s32 1, %s3
  %s6 = scalar_select 0, %s5, %s3
  $region1: #{tpu_custom_call.1} parent=0
    #allocation2 [shape = 'u8[4096]{0}', space=vmem, size = 0x1000, scoped, tag = 'input window, operand 0, single buffered']
    #allocation3 [shape = 's32[1]{0}', space=sflag, size = 0x4, scoped, tag = 'scoped memory for tpu_custom_call.1']
    #allocation4 [shape = 's32[1]{0}', space=sflag, size = 0x4, scoped, tag = 'scoped memory for tpu_custom_call.1']
    #allocation5 [shape = 'u8[131072]{0}', space=vmem, size = 0x20000, scoped, tag = 'input window, operand 1, single buffered']
    #allocation6 [shape = 's32[1]{0}', space=sflag, size = 0x4, scoped, tag = 'scoped memory for tpu_custom_call.1']
    #allocation7 [shape = 'u8[2048]{0}', space=vmem, size = 0x800, scoped, tag = 'output window, operand 0, single buffered']
    %7 = vsyncpa [#allocation3], 0
    %8 = vsyncpa [#allocation6], 0
    %9 = vsyncpa [#allocation4], 0
    // Predicated region
    $region2: #{tpu_custom_call.1} parent=1 // pred_check
      _
    $region3: #{tpu_custom_call.1} parent=1 // pred_check_branch
      %11 = sbr.rel (0) target = $region5
    $region4: #{tpu_custom_call.1} parent=1 // pred_region
      %s13 = ssub.s32 128, 128
      %14 = vsyncadd [#allocation3], %s13
      %s16 = sshll.u32 [#allocation2], 4
      %s17 = int_to_ptr.vmem [resolvable:$true] %s16
      %19 = dma.hbm_to_vmem [thread:$0]  %s0, 128, %s17, [#allocation3]
    $region5: #{tpu_custom_call.1} parent=1 // pred_fallthru
      _
    // Predicated region
    $region6: #{tpu_custom_call.1} parent=1 // pred_check
      _
    $region7: #{tpu_custom_call.1} parent=1 // pred_check_branch
      %21 = sbr.rel (0) target = $region9
    $region8: #{tpu_custom_call.1} parent=1 // pred_region
      %s23 = ssub.s32 4096, 4096
      %24 = vsyncadd [#allocation6], %s23
      %s25 = sshll.u32 [#allocation5], 4
      %s26 = int_to_ptr.vmem [resolvable:$true] %s25
      %31 = dma.hbm_to_vmem [thread:$0]  %s1, 4096, %s26, [#allocation6], 64, 64, 4
    $region9: #{tpu_custom_call.1} parent=1 // pred_fallthru
      _
    // Predicated region
    $region10: #{tpu_custom_call.1} parent=1 // pred_check
      _
    $region11: #{tpu_custom_call.1} parent=1 // pred_check_branch
      %33 = sbr.rel (0) target = $region13
    $region12: #{tpu_custom_call.1} parent=1 // pred_region
      %34 = dma.done [#allocation3], 128
    $region13: #{tpu_custom_call.1} parent=1 // pred_fallthru
      _
    // Predicated region
    $region14: #{tpu_custom_call.1} parent=1 // pred_check
      _
    $region15: #{tpu_custom_call.1} parent=1 // pred_check_branch
      %36 = sbr.rel (0) target = $region17
    $region16: #{tpu_custom_call.1} parent=1 // pred_region
      %37 = dma.done [#allocation6], 4096
    $region17: #{tpu_custom_call.1} parent=1 // pred_fallthru
      _
    %v39 = vld [vmem:[#allocation2] sm:$0xff]
    %v40 = vld [vmem:[#allocation5] sm:$0xf]
    %v41 = vld [vmem:[#allocation5 + $0x4] sm:$0xf]
    %v42 = vld [vmem:[#allocation5 + $0x8] sm:$0xf]
    %v43 = vld [vmem:[#allocation5 + $0xc] sm:$0xf]
    %v44 = vld [vmem:[#allocation5 + $0x10] sm:$0xf]
    %v45 = vld [vmem:[#allocation5 + $0x14] sm:$0xf]
    %v46 = vld [vmem:[#allocation5 + $0x18] sm:$0xf]
    %v47 = vld [vmem:[#allocation5 + $0x1c] sm:$0xf]
    %v48 = vld [vmem:[#allocation5 + $0x20] sm:$0xf]
    %v49 = vld [vmem:[#allocation5 + $0x24] sm:$0xf]
    %v50 = vld [vmem:[#allocation5 + $0x28] sm:$0xf]
    %v51 = vld [vmem:[#allocation5 + $0x2c] sm:$0xf]
    %v52 = vld [vmem:[#allocation5 + $0x30] sm:$0xf]
    %v53 = vld [vmem:[#allocation5 + $0x34] sm:$0xf]
    %v54 = vld [vmem:[#allocation5 + $0x38] sm:$0xf]
    %v55 = vld [vmem:[#allocation5 + $0x3c] sm:$0xf]
    %v56 = vld [vmem:[#allocation5 + $0x40] sm:$0xf]
    %v57 = vld [vmem:[#allocation5 + $0x44] sm:$0xf]
    %v58 = vld [vmem:[#allocation5 + $0x48] sm:$0xf]
    %v59 = vld [vmem:[#allocation5 + $0x4c] sm:$0xf]
    %v60 = vld [vmem:[#allocation5 + $0x50] sm:$0xf]
    %v61 = vld [vmem:[#allocation5 + $0x54] sm:$0xf]
    %v62 = vld [vmem:[#allocation5 + $0x58] sm:$0xf]
    %v63 = vld [vmem:[#allocation5 + $0x5c] sm:$0xf]
    %v64 = vld [vmem:[#allocation5 + $0x60] sm:$0xf]
    %v65 = vld [vmem:[#allocation5 + $0x64] sm:$0xf]
    %v66 = vld [vmem:[#allocation5 + $0x68] sm:$0xf]
    %v67 = vld [vmem:[#allocation5 + $0x6c] sm:$0xf]
    %v68 = vld [vmem:[#allocation5 + $0x70] sm:$0xf]
    %v69 = vld [vmem:[#allocation5 + $0x74] sm:$0xf]
    %v70 = vld [vmem:[#allocation5 + $0x78] sm:$0xf]
    %v71 = vld [vmem:[#allocation5 + $0x7c] sm:$0xf]
    %v72 = vld [vmem:[#allocation5 + $0x80] sm:$0xf]
    %v73 = vld [vmem:[#allocation5 + $0x84] sm:$0xf]
    %v74 = vld [vmem:[#allocation5 + $0x88] sm:$0xf]
    %v75 = vld [vmem:[#allocation5 + $0x8c] sm:$0xf]
    %v76 = vld [vmem:[#allocation5 + $0x90] sm:$0xf]
    %v77 = vld [vmem:[#allocation5 + $0x94] sm:$0xf]
    %v78 = vld [vmem:[#allocation5 + $0x98] sm:$0xf]
    %v79 = vld [vmem:[#allocation5 + $0x9c] sm:$0xf]
    %v80 = vld [vmem:[#allocation5 + $0xa0] sm:$0xf]
    %v81 = vld [vmem:[#allocation5 + $0xa4] sm:$0xf]
    %v82 = vld [vmem:[#allocation5 + $0xa8] sm:$0xf]
    %v83 = vld [vmem:[#allocation5 + $0xac] sm:$0xf]
    %v84 = vld [vmem:[#allocation5 + $0xb0] sm:$0xf]
    %v85 = vld [vmem:[#allocation5 + $0xb4] sm:$0xf]
    %v86 = vld [vmem:[#allocation5 + $0xb8] sm:$0xf]
    %v87 = vld [vmem:[#allocation5 + $0xbc] sm:$0xf]
    %v88 = vld [vmem:[#allocation5 + $0xc0] sm:$0xf]
    %v89 = vld [vmem:[#allocation5 + $0xc4] sm:$0xf]
    %v90 = vld [vmem:[#allocation5 + $0xc8] sm:$0xf]
    %v91 = vld [vmem:[#allocation5 + $0xcc] sm:$0xf]
    %v92 = vld [vmem:[#allocation5 + $0xd0] sm:$0xf]
    %v93 = vld [vmem:[#allocation5 + $0xd4] sm:$0xf]
    %v94 = vld [vmem:[#allocation5 + $0xd8] sm:$0xf]
    %v95 = vld [vmem:[#allocation5 + $0xdc] sm:$0xf]
    %v96 = vld [vmem:[#allocation5 + $0xe0] sm:$0xf]
    %v97 = vld [vmem:[#allocation5 + $0xe4] sm:$0xf]
    %v98 = vld [vmem:[#allocation5 + $0xe8] sm:$0xf]
    %v99 = vld [vmem:[#allocation5 + $0xec] sm:$0xf]
    %v100 = vld [vmem:[#allocation5 + $0xf0] sm:$0xf]
    %v101 = vld [vmem:[#allocation5 + $0xf4] sm:$0xf]
    %v102 = vld [vmem:[#allocation5 + $0xf8] sm:$0xf]
    %v103 = vld [vmem:[#allocation5 + $0xfc] sm:$0xf]
    %v105 = vcombine.high %v39, %v39
    %v107 = vunpack.c.l.s4 1983009808
    %v108 = vunpack.c.0.s8 %v107
    %v109 = vlaneseq
    %v110 = vshrl.u32 %v109, 7
    %v111 = vsub.s32 %v108, %v110
    %v112 = vrot.slane %v39, %v111
    %v114 = vunpack.c.l.s4 1983009808
    %v115 = vunpack.c.0.s8 %v114
    %v116 = vlaneseq
    %v117 = vshrl.u32 %v116, 7
    %v118 = vsub.s32 %v115, %v117
    %v119 = vrot.slane %v105, %v118
    %v120 = vcombine.high %v112, %v112
    %v121 = vcombine.high %v119, %v119
    %v190 = vunpack.c.l.b16 %v40
    %v191 = vunpack.c.l.b16 %v41
    %v192 = vunpack.c.l.b16 %v42
    %v193 = vunpack.c.l.b16 %v43
    %v194 = vunpack.c.l.b16 %v44
    %v195 = vunpack.c.l.b16 %v45
    %v196 = vunpack.c.l.b16 %v46
    %v197 = vunpack.c.l.b16 %v47
    %v198 = vunpack.c.l.b16 %v48
    %v199 = vunpack.c.l.b16 %v49
    %v200 = vunpack.c.l.b16 %v50
    %v201 = vunpack.c.l.b16 %v51
    %v202 = vunpack.c.l.b16 %v52
    %v203 = vunpack.c.l.b16 %v53
    %v204 = vunpack.c.l.b16 %v54
    %v205 = vunpack.c.l.b16 %v55
    %v206 = vunpack.c.l.b16 %v56
    %v207 = vunpack.c.l.b16 %v57
    %v208 = vunpack.c.l.b16 %v58
    %v209 = vunpack.c.l.b16 %v59
    %v210 = vunpack.c.l.b16 %v60
    %v211 = vunpack.c.l.b16 %v61
    %v212 = vunpack.c.l.b16 %v62
    %v213 = vunpack.c.l.b16 %v63
    %v214 = vunpack.c.l.b16 %v64
    %v215 = vunpack.c.l.b16 %v65
    %v216 = vunpack.c.l.b16 %v66
    %v217 = vunpack.c.l.b16 %v67
    %v218 = vunpack.c.l.b16 %v68
    %v219 = vunpack.c.l.b16 %v69
    %v220 = vunpack.c.l.b16 %v70
    %v221 = vunpack.c.l.b16 %v71
    %v222 = vunpack.c.l.b16 %v72
    %v223 = vunpack.c.l.b16 %v73
    %v224 = vunpack.c.l.b16 %v74
    %v225 = vunpack.c.l.b16 %v75
    %v226 = vunpack.c.l.b16 %v76
    %v227 = vunpack.c.l.b16 %v77
    %v228 = vunpack.c.l.b16 %v78
    %v229 = vunpack.c.l.b16 %v79
    %v230 = vunpack.c.l.b16 %v80
    %v231 = vunpack.c.l.b16 %v81
    %v232 = vunpack.c.l.b16 %v82
    %v233 = vunpack.c.l.b16 %v83
    %v234 = vunpack.c.l.b16 %v84
    %v235 = vunpack.c.l.b16 %v85
    %v236 = vunpack.c.l.b16 %v86
    %v237 = vunpack.c.l.b16 %v87
    %v238 = vunpack.c.l.b16 %v88
    %v239 = vunpack.c.l.b16 %v89
    %v240 = vunpack.c.l.b16 %v90
    %v241 = vunpack.c.l.b16 %v91
    %v242 = vunpack.c.l.b16 %v92
    %v243 = vunpack.c.l.b16 %v93
    %v244 = vunpack.c.l.b16 %v94
    %v245 = vunpack.c.l.b16 %v95
    %v246 = vunpack.c.l.b16 %v96
    %v247 = vunpack.c.l.b16 %v97
    %v248 = vunpack.c.l.b16 %v98
    %v249 = vunpack.c.l.b16 %v99
    %v250 = vunpack.c.l.b16 %v100
    %v251 = vunpack.c.l.b16 %v101
    %v252 = vunpack.c.l.b16 %v102
    %v253 = vunpack.c.l.b16 %v103
    %v254 = vpack.c.b16 %v191, %v190
    %v255 = vpack.c.b16 %v193, %v192
    %v256 = vpack.c.b16 %v195, %v194
    %v257 = vpack.c.b16 %v197, %v196
    %v258 = vpack.c.b16 %v199, %v198
    %v259 = vpack.c.b16 %v201, %v200
    %v260 = vpack.c.b16 %v203, %v202
    %v261 = vpack.c.b16 %v205, %v204
    %v262 = vpack.c.b16 %v207, %v206
    %v263 = vpack.c.b16 %v209, %v208
    %v264 = vpack.c.b16 %v211, %v210
    %v265 = vpack.c.b16 %v213, %v212
    %v266 = vpack.c.b16 %v215, %v214
    %v267 = vpack.c.b16 %v217, %v216
    %v268 = vpack.c.b16 %v219, %v218
    %v269 = vpack.c.b16 %v221, %v220
    %v270 = vpack.c.b16 %v223, %v222
    %v271 = vpack.c.b16 %v225, %v224
    %v272 = vpack.c.b16 %v227, %v226
    %v273 = vpack.c.b16 %v229, %v228
    %v274 = vpack.c.b16 %v231, %v230
    %v275 = vpack.c.b16 %v233, %v232
    %v276 = vpack.c.b16 %v235, %v234
    %v277 = vpack.c.b16 %v237, %v236
    %v278 = vpack.c.b16 %v239, %v238
    %v279 = vpack.c.b16 %v241, %v240
    %v280 = vpack.c.b16 %v243, %v242
    %v281 = vpack.c.b16 %v245, %v244
    %v282 = vpack.c.b16 %v247, %v246
    %v283 = vpack.c.b16 %v249, %v248
    %v284 = vpack.c.b16 %v251, %v250
    %v285 = vpack.c.b16 %v253, %v252
    %318 = vmatprep.subr.bf16.mxu0 0
    %319 = vmatpush1.bf16.msra.mxu0 %v254
    %320 = vmatprep.subr.bf16.mxu0 0
    %321 = vmatpush1.bf16.msra.mxu0 %v255
    %322 = vmatprep.subr.bf16.mxu0 0
    %323 = vmatpush1.bf16.msra.mxu0 %v256
    %324 = vmatprep.subr.bf16.mxu0 0
    %325 = vmatpush1.bf16.msra.mxu0 %v257
    %326 = vmatprep.subr.bf16.mxu0 0
    %327 = vmatpush1.bf16.msra.mxu0 %v258
    %328 = vmatprep.subr.bf16.mxu0 0
    %329 = vmatpush1.bf16.msra.mxu0 %v259
    %330 = vmatprep.subr.bf16.mxu0 0
    %331 = vmatpush1.bf16.msra.mxu0 %v260
    %332 = vmatprep.subr.bf16.mxu0 0
    %333 = vmatpush1.bf16.msra.mxu0 %v261
    %334 = vmatprep.subr.bf16.mxu0 0
    %335 = vmatpush1.bf16.msra.mxu0 %v262
    %336 = vmatprep.subr.bf16.mxu0 0
    %337 = vmatpush1.bf16.msra.mxu0 %v263
    %338 = vmatprep.subr.bf16.mxu0 0
    %339 = vmatpush1.bf16.msra.mxu0 %v264
    %340 = vmatprep.subr.bf16.mxu0 0
    %341 = vmatpush1.bf16.msra.mxu0 %v265
    %342 = vmatprep.subr.bf16.mxu0 0
    %343 = vmatpush1.bf16.msra.mxu0 %v266
    %344 = vmatprep.subr.bf16.mxu0 0
    %345 = vmatpush1.bf16.msra.mxu0 %v267
    %346 = vmatprep.subr.bf16.mxu0 0
    %347 = vmatpush1.bf16.msra.mxu0 %v268
    %348 = vmatprep.subr.bf16.mxu0 0
    %349 = vmatpush1.bf16.msra.mxu0 %v269
    %350 = vmatprep.mubr.bf16.mxu0 %v120
    %351 = vmatmul.mubr.bf16.gmra.mrb[0].mxu0 %v112
    %v352 = vpop.f32.mrb[0].mxu0
    %v353 = vadd.f32 0.0, %v352
    %v354 = vpop.f32.mrb[0].mxu0
    %v355 = vpop.f32.mrb[0].mxu0
    %v356 = vpop.f32.mrb[0].mxu0
    %357 = vdwg.mxu0
    %358 = vmatprep.subr.bf16.mxu0 0
    %359 = vmatpush1.bf16.msra.mxu0 %v270
    %360 = vmatprep.subr.bf16.mxu0 0
    %361 = vmatpush1.bf16.msra.mxu0 %v271
    %362 = vmatprep.subr.bf16.mxu0 0
    %363 = vmatpush1.bf16.msra.mxu0 %v272
    %364 = vmatprep.subr.bf16.mxu0 0
    %365 = vmatpush1.bf16.msra.mxu0 %v273
    %366 = vmatprep.subr.bf16.mxu0 0
    %367 = vmatpush1.bf16.msra.mxu0 %v274
    %368 = vmatprep.subr.bf16.mxu0 0
    %369 = vmatpush1.bf16.msra.mxu0 %v275
    %370 = vmatprep.subr.bf16.mxu0 0
    %371 = vmatpush1.bf16.msra.mxu0 %v276
    %372 = vmatprep.subr.bf16.mxu0 0
    %373 = vmatpush1.bf16.msra.mxu0 %v277
    %374 = vmatprep.subr.bf16.mxu0 0
    %375 = vmatpush1.bf16.msra.mxu0 %v278
    %376 = vmatprep.subr.bf16.mxu0 0
    %377 = vmatpush1.bf16.msra.mxu0 %v279
    %378 = vmatprep.subr.bf16.mxu0 0
    %379 = vmatpush1.bf16.msra.mxu0 %v280
    %380 = vmatprep.subr.bf16.mxu0 0
    %381 = vmatpush1.bf16.msra.mxu0 %v281
    %382 = vmatprep.subr.bf16.mxu0 0
    %383 = vmatpush1.bf16.msra.mxu0 %v282
    %384 = vmatprep.subr.bf16.mxu0 0
    %385 = vmatpush1.bf16.msra.mxu0 %v283
    %386 = vmatprep.subr.bf16.mxu0 0
    %387 = vmatpush1.bf16.msra.mxu0 %v284
    %388 = vmatprep.subr.bf16.mxu0 0
    %389 = vmatpush1.bf16.msra.mxu0 %v285
    %390 = vmatprep.mubr.bf16.mxu0 %v121
    %391 = vmatmul.mubr.bf16.gmra.mrb[0].mxu0 %v119
    %v392 = vpop.f32.mrb[0].mxu0
    %v393 = vadd.f32 %v353, %v392
    %v394 = vpop.f32.mrb[0].mxu0
    %v395 = vpop.f32.mrb[0].mxu0
    %v396 = vpop.f32.mrb[0].mxu0
    %397 = vdwg.mxu0
    %398 = vst [vmem:[#allocation7] sm:$0xf] %v393
    // Predicated region
    $region18: #{tpu_custom_call.1} parent=1 // pred_check
      _
    $region19: #{tpu_custom_call.1} parent=1 // pred_check_branch
      %400 = sbr.rel (0) target = $region21
    $region20: #{tpu_custom_call.1} parent=1 // pred_region
      %s402 = ssub.s32 64, 64
      %403 = vsyncadd [#allocation4], %s402
      %s405 = sshll.u32 [#allocation7], 4
      %s406 = int_to_ptr.vmem [resolvable:$true] %s405
      %408 = dma.vmem_to_hbm [thread:$0]  %s406, 64, %s2, [#allocation4]
    $region21: #{tpu_custom_call.1} parent=1 // pred_fallthru
      _
    // Predicated region
    $region22: #{tpu_custom_call.1} parent=1 // pred_check
      _
    $region23: #{tpu_custom_call.1} parent=1 // pred_check_branch
      %410 = sbr.rel (0) target = $region25
    $region24: #{tpu_custom_call.1} parent=1 // pred_region
      %411 = dma.done [#allocation4], 64
    $region25: #{tpu_custom_call.1} parent=1 // pred_fallthru
      _
    %412 = vsyncpa [#allocation3], 1
    %413 = vsyncpa [#allocation6], 1
    %414 = vsyncpa [#allocation4], 1

</llo_original>
